<compile_context>
chip_gen: v6e
topology: v6e:2x2x1
jax: 0.10.0
libtpu: 0.0.40
codegen_flags: <defaults>
</compile_context>

<pallas_src>
import functools

import jax
import jax.numpy as jnp
from jax import lax
from jax.experimental import pallas as pl
from jax.experimental.pallas import tpu as pltpu

HIDDEN = 128
LANE = 128
SUBLANE = 8
VMEM_LIMIT_BYTES = 32 * 1024 * 1024       # explicit scoped-VMEM limit (safe on v5e/v6e/v7x)
VMEM_PIPELINE_BUDGET = 16 * 1024 * 1024   # budget used to derive the batch-tile row cap


def dnn_kernel(x_ref, w1_ref, b1_ref, w2t_ref, b2t_ref, ot_ref):
    """fc1 -> ReLU -> fc2 fused; one batch tile per grid step.

    Weights/biases use constant index_maps so they stay VMEM-resident across the
    whole grid. fc2 is evaluated in transposed form O^T = W2^T @ H^T so the output
    is a narrow [out_rows, TB] slab whose lane axis is the batch (lane-dense store,
    ~16x fewer HBM output bytes than a 128-column-padded layout for tiny output_dim).
    """
    x = x_ref[...].astype(w1_ref.dtype)                       # in-kernel cast (VPU, free here)
    h = jnp.dot(x, w1_ref[...],
                preferred_element_type=jnp.float32)            # [TB, 128]   (MXU)
    h = jnp.maximum(h + b1_ref[...], 0.0)                      # bias + ReLU in f32 (VPU)
    # O^T = W2^T @ H^T  via dot_general with both contracting dims = 1 (A @ B^T form)
    ot = lax.dot_general(w2t_ref[...], h.astype(w2t_ref.dtype),
                         dimension_numbers=(((1,), (1,)), ((), ())),
                         preferred_element_type=jnp.float32)   # [out_rows, TB] (MXU)
    ot = ot + b2t_ref[...]                                     # [out_rows, 1] lane-broadcast
    ot_ref[...] = ot.astype(ot_ref.dtype)                      # lane-dense store


def _round_up(x, m):
    return ((x + m - 1) // m) * m


def _cdiv(a, b):
    return (a + b - 1) // b


def _pick_batch_tile(batch, input_dim, out_rows, x_elt, w_elt, tile_cap):
    """Batch-tile rows: as large as the VMEM budget allows, a multiple of 128 when
    tiled (keeps x/out blocks (8,128)-legal and output stores lane-dense), and at
    least 2 grid steps when the batch allows (both TCs busy on v7x)."""
    if batch <= LANE:
        return batch                                  # single full-extent tile
    # Per-row VMEM: x double-buffer + out double-buffer + f32 h temp; plus the
    # (double-buffered) pinned weights/biases.
    per_row = 2 * input_dim * x_elt + 2 * out_rows * 4 + HIDDEN * 4
    fixed = 2 * ((input_dim + out_rows) * HIDDEN * w_elt + (HIDDEN + out_rows) * 4)
    vmem_rows = max(LANE, ((VMEM_PIPELINE_BUDGET - fixed) // per_row) // LANE * LANE)
    cap = max(LANE, min(_round_up(tile_cap, LANE), vmem_rows))
    tb = min(cap, _round_up(batch, LANE))
    if tb >= batch:                                   # force >= 2 grid steps (megacore)
        tb = _round_up(_cdiv(batch, 2), LANE)
    return tb


@functools.partial(jax.jit, static_argnames=("input_dim", "tile_b", "compute_dtype"))
def dnn_forward(x, w1, b1, w2, b2, input_dim, *, tile_b=4096,
                compute_dtype=jnp.float32):
    """Forward pass equivalent to the PyTorch DNN module.

    x:  any shape whose trailing elements flatten to input_dim per row
    w1: [input_dim, 128], b1: [1, 128]
    w2: [128, output_dim], b2: [1, output_dim]
    Returns [batch, output_dim] float32.
    """
    x2d = x.reshape(-1, input_dim)            # torch's x.view(-1, input_dim); no dtype cast
    batch = x2d.shape[0]
    output_dim = w2.shape[1]
    out_rows = _round_up(max(output_dim, SUBLANE), SUBLANE)

    x_elt = x2d.dtype.itemsize
    w_elt = jnp.dtype(compute_dtype).itemsize
    tb = _pick_batch_tile(batch, input_dim, out_rows, x_elt, w_elt, tile_b)
    grid = (_cdiv(batch, tb),)                # ragged edge block handled by Pallas

    # Tiny one-time parameter reshapes (a few KB): fc2 transposed to [out_rows, 128],
    # rows padded to a sublane multiple; biases kept in f32.
    w1c = w1.astype(compute_dtype)
    w2t = jnp.pad(w2.T, ((0, out_rows - output_dim), (0, 0))).astype(compute_dtype)
    b1c = b1.reshape(1, HIDDEN).astype(jnp.float32)
    b2t = jnp.pad(b2.reshape(output_dim, 1),
                  ((0, out_rows - output_dim), (0, 0))).astype(jnp.float32)

    cost = pl.CostEstimate(
        flops=2 * batch * input_dim * HIDDEN + 2 * batch * HIDDEN * out_rows,
        transcendentals=0,
        bytes_accessed=(batch * input_dim * x_elt              # x in
                        + (input_dim + out_rows) * HIDDEN * w_elt   # w1 + w2^T
                        + (HIDDEN + out_rows) * 4              # biases
                        + out_rows * batch * 4),               # narrow out
    )

    out_t = pl.pallas_call(
        dnn_kernel,
        out_shape=jax.ShapeDtypeStruct((out_rows, batch), jnp.float32),
        grid=grid,
        in_specs=[
            pl.BlockSpec((tb, input_dim), lambda i: (i, 0)),       # x batch tile
            pl.BlockSpec((input_dim, HIDDEN), lambda i: (0, 0)),   # w1   (pinned)
            pl.BlockSpec((1, HIDDEN), lambda i: (0, 0)),           # b1   (pinned)
            pl.BlockSpec((out_rows, HIDDEN), lambda i: (0, 0)),    # w2^T (pinned)
            pl.BlockSpec((out_rows, 1), lambda i: (0, 0)),         # b2^T (pinned)
        ],
        out_specs=pl.BlockSpec((out_rows, tb), lambda i: (0, i)),  # lane axis = batch
        compiler_params=pltpu.CompilerParams(
            dimension_semantics=("parallel",),                     # 2 TCs on v7x
            vmem_limit_bytes=VMEM_LIMIT_BYTES,
        ),
        cost_estimate=cost,
    )(x2d, w1c, b1c, w2t, b2t)

    # Back to the PyTorch layout [batch, output_dim]; tiny (batch*output_dim*4 B).
    return out_t[:output_dim, :].T


def init_params(key, input_dim, output_dim):
    # Deterministic init mirroring torch.nn.Linear defaults:
    # U(-1/sqrt(fan_in), 1/sqrt(fan_in)) for both weight and bias.
    k1, k2, k3, k4 = jax.random.split(key, 4)
    bound1 = 1.0 / jnp.sqrt(jnp.float32(input_dim))
    bound2 = 1.0 / jnp.sqrt(jnp.float32(HIDDEN))
    w1 = jax.random.uniform(k1, (input_dim, HIDDEN), jnp.float32, -bound1, bound1)
    b1 = jax.random.uniform(k2, (1, HIDDEN), jnp.float32, -bound1, bound1)
    w2 = jax.random.uniform(k3, (HIDDEN, output_dim), jnp.float32, -bound2, bound2)
    b2 = jax.random.uniform(k4, (1, output_dim), jnp.float32, -bound2, bound2)
    return w1, b1, w2, b2


if __name__ == "__main__":
    input_dim = 64     # e.g. a flattened 4x16 observation
    output_dim = 8     # number of actions

    key = jax.random.PRNGKey(0)
    kx, kp, kx2 = jax.random.split(key, 3)
    w1, b1, w2, b2 = init_params(kp, input_dim, output_dim)

    def ref_fn(x):
        x2d = x.reshape(-1, input_dim)
        return jnp.maximum(x2d @ w1 + b1, 0.0) @ w2 + b2

    # --- Small-shape test (batch=2), matches the PyTorch module's forward. ---
    batch = 2
    x = jax.random.normal(kx, (batch, 4, 16), jnp.float32)
    out = jax.block_until_ready(dnn_forward(x, w1, b1, w2, b2, input_dim))
    assert out.shape == (batch, output_dim)
    assert jnp.allclose(out, ref_fn(x), atol=1e-5, rtol=1e-5)

    # --- Larger, non-tile-multiple batch: exercises grid > 1 with a ragged edge
    #     block, pinned weights, and the narrow transposed output. ---
    batch2 = 300
    x2 = jax.random.normal(kx2, (batch2, 4, 16), jnp.float32)
    out2 = jax.block_until_ready(dnn_forward(x2, w1, b1, w2, b2, input_dim))
    assert out2.shape == (batch2, output_dim)
    assert jnp.allclose(out2, ref_fn(x2), atol=1e-5, rtol=1e-5)

    # --- bf16 weights / MXU inputs (x cast in-kernel, f32 accumulation). ---
    out3 = jax.block_until_ready(
        dnn_forward(x2, w1, b1, w2, b2, input_dim, compute_dtype=jnp.bfloat16))
    assert out3.shape == (batch2, output_dim)
    assert jnp.allclose(out3, ref_fn(x2), atol=5e-2, rtol=5e-2)

    print("KERNEL_OK")
</pallas_src>

<mosaic_0001>
module attributes {stable_mosaic.version = 11 : i64} {
  func.func @dnn_kernel(%arg0: i32, %arg1: memref<2x64xf32, #tpu.memory_space<vmem>>, %arg2: memref<64x128xf32, #tpu.memory_space<vmem>>, %arg3: memref<1x128xf32, #tpu.memory_space<vmem>>, %arg4: memref<8x128xf32, #tpu.memory_space<vmem>>, %arg5: memref<8x1xf32, #tpu.memory_space<vmem>>, %arg6: memref<8x2xf32, #tpu.memory_space<vmem>>) attributes {dimension_semantics = [#tpu.dimension_semantics<parallel>], iteration_bounds = array<i64: 1>, scalar_prefetch = 0 : i64, scratch_operands = 0 : i64, tpu.core_type = #tpu.core_type<tc>, window_params = [{transform_indices = @transform_0, window_bounds = array<i64: 2, 64>}, {pipeline_mode = #tpu.pipeline_mode<synchronous>, transform_indices = @transform_1, window_bounds = array<i64: 64, 128>}, {pipeline_mode = #tpu.pipeline_mode<synchronous>, transform_indices = @transform_2, window_bounds = array<i64: 1, 128>}, {pipeline_mode = #tpu.pipeline_mode<synchronous>, transform_indices = @transform_3, window_bounds = array<i64: 8, 128>}, {pipeline_mode = #tpu.pipeline_mode<synchronous>, transform_indices = @transform_4, window_bounds = array<i64: 8, 1>}, {transform_indices = @transform_5, window_bounds = array<i64: 8, 2>}]} {
    %c0 = arith.constant 0 : index
    %c0_0 = arith.constant 0 : index
    %0 = vector.load %arg1[%c0, %c0_0] : memref<2x64xf32, #tpu.memory_space<vmem>>, vector<2x64xf32>
    %c0_1 = arith.constant 0 : index
    %c0_2 = arith.constant 0 : index
    %1 = vector.load %arg2[%c0_1, %c0_2] : memref<64x128xf32, #tpu.memory_space<vmem>>, vector<64x128xf32>
    %cst = arith.constant dense<0.000000e+00> : vector<2x128xf32>
    %2 = tpu.matmul %0, %1, %cst {dimension_numbers = #tpu.dot_dimension_numbers<[1], [0], [0], [1], [0, 0, 1, 1], [], []>} : vector<2x64xf32>, vector<64x128xf32>, vector<2x128xf32> -> vector<2x128xf32>
    %c0_3 = arith.constant 0 : index
    %c0_4 = arith.constant 0 : index
    %3 = vector.load %arg3[%c0_3, %c0_4] : memref<1x128xf32, #tpu.memory_space<vmem>>, vector<1x128xf32>
    %4 = vector.broadcast %3 : vector<1x128xf32> to vector<2x128xf32>
    %5 = arith.addf %2, %4 : vector<2x128xf32>
    %cst_5 = arith.constant 0.000000e+00 : f32
    %6 = vector.broadcast %cst_5 : f32 to vector<2x128xf32>
    %7 = arith.maximumf %5, %6 : vector<2x128xf32>
    %c0_6 = arith.constant 0 : index
    %c0_7 = arith.constant 0 : index
    %8 = vector.load %arg4[%c0_6, %c0_7] : memref<8x128xf32, #tpu.memory_space<vmem>>, vector<8x128xf32>
    %cst_8 = arith.constant dense<0.000000e+00> : vector<8x2xf32>
    %9 = tpu.matmul %8, %7, %cst_8 {dimension_numbers = #tpu.dot_dimension_numbers<[1], [1], [0], [0], [0, 0, 1, 0], [], []>} : vector<8x128xf32>, vector<2x128xf32>, vector<8x2xf32> -> vector<8x2xf32>
    %c0_9 = arith.constant 0 : index
    %c0_10 = arith.constant 0 : index
    %10 = vector.load %arg5[%c0_9, %c0_10] : memref<8x1xf32, #tpu.memory_space<vmem>>, vector<8x1xf32>
    %11 = vector.broadcast %10 : vector<8x1xf32> to vector<8x2xf32>
    %12 = arith.addf %9, %11 : vector<8x2xf32>
    %c0_11 = arith.constant 0 : index
    %c0_12 = arith.constant 0 : index
    %13 = vector.load %arg6[%c0_11, %c0_12] : memref<8x2xf32, #tpu.memory_space<vmem>>, vector<8x2xf32>
    tpu.vector_store %arg6[%c0_11, %c0_12], %12 {strides = array<i32>} : memref<8x2xf32, #tpu.memory_space<vmem>>, vector<8x2xf32>,
    return
  }
  func.func @transform_0(%arg0: i32) -> (i32, i32) {
    %c0_i32 = arith.constant 0 : i32
    %c0_i32_0 = arith.constant 0 : i32
    return %arg0, %c0_i32 : i32, i32
  }
  func.func @transform_1(%arg0: i32) -> (i32, i32) {
    %c0_i32 = arith.constant 0 : i32
    %c0_i32_0 = arith.constant 0 : i32
    %c0_i32_1 = arith.constant 0 : i32
    return %c0_i32, %c0_i32_0 : i32, i32
  }
  func.func @transform_2(%arg0: i32) -> (i32, i32) {
    %c0_i32 = arith.constant 0 : i32
    %c0_i32_0 = arith.constant 0 : i32
    %c0_i32_1 = arith.constant 0 : i32
    return %c0_i32, %c0_i32_0 : i32, i32
  }
  func.func @transform_3(%arg0: i32) -> (i32, i32) {
    %c0_i32 = arith.constant 0 : i32
    %c0_i32_0 = arith.constant 0 : i32
    %c0_i32_1 = arith.constant 0 : i32
    return %c0_i32, %c0_i32_0 : i32, i32
  }
  func.func @transform_4(%arg0: i32) -> (i32, i32) {
    %c0_i32 = arith.constant 0 : i32
    %c0_i32_0 = arith.constant 0 : i32
    %c0_i32_1 = arith.constant 0 : i32
    return %c0_i32, %c0_i32_0 : i32, i32
  }
  func.func @transform_5(%arg0: i32) -> (i32, i32) {
    %c0_i32 = arith.constant 0 : i32
    %c0_i32_0 = arith.constant 0 : i32
    return %c0_i32, %arg0 : i32, i32
  }
}

</mosaic_0001>

<llo_original>
// kernel: dnn_forward.1
$region0: #{dnn_forward.1}
  #allocation0 [shape = 'u32[]', space=smem, size = 0x4, offset = 0x4, fixed_abs, tag = 'smem constant byte address 0x4 - core index']
  #allocation1 [shape = 'u32[144,128]{1,0:T(1,128)}', space=vmem, size = 0x12000, scoped, tag = 'internal scratch']
  %s0 = inlined_call_operand.vmem [shape: f32[2,64], index: 0, kind: input, shape index: {}]
  %s1 = inlined_call_operand.hbm [shape: f32[64,128], index: 1, kind: input, shape index: {}]
  %s2 = inlined_call_operand.vmem [shape: f32[1,128], index: 2, kind: input, shape index: {}]
  %s3 = inlined_call_operand.vmem [shape: f32[8,128], index: 3, kind: input, shape index: {}]
  %s4 = inlined_call_operand.vmem [shape: f32[8,1], index: 4, kind: input, shape index: {}]
  %s5 = inlined_call_operand.vmem [shape: f32[8,2], index: 5, kind: output, shape index: {}]
  %s6 = sld [smem:[#allocation0]]
  $region34: #{dnn_forward.1} parent=0
    _
  %s8 = ssub.s32 1, %s6
  %s9 = scalar_select 0, %s8, %s6
  $region1: #{dnn_forward.1} parent=0
    #allocation2 [shape = 'u8[32768]{0}', space=vmem, size = 0x8000, scoped, tag = 'input window, operand 1, single buffered']
    #allocation3 [shape = 's32[1]{0}', space=sflag, size = 0x4, scoped, tag = 'scoped memory for dnn_forward.1']
    %10 = vsyncpa [#allocation3], 0
    // Predicated region
    $region2: #{dnn_forward.1} parent=1 // pred_check
      _
    $region3: #{dnn_forward.1} parent=1 // pred_check_branch
      %12 = sbr.rel (0) target = $region5
    $region4: #{dnn_forward.1} parent=1 // pred_region
      _
    $region5: #{dnn_forward.1} parent=1 // pred_fallthru
      _
    // Predicated region
    $region6: #{dnn_forward.1} parent=1 // pred_check
      _
    $region7: #{dnn_forward.1} parent=1 // pred_check_branch
      %14 = sbr.rel (0) target = $region9
    $region8: #{dnn_forward.1} parent=1 // pred_region
      %s16 = ssub.s32 1024, 1024
      %17 = vsyncadd [#allocation3], %s16
      %s18 = sshll.u32 [#allocation2], 4
      %s19 = int_to_ptr.vmem [resolvable:$true] %s18
      %24 = dma.hbm_to_vmem [thread:$0]  %s1, 1024, %s19, [#allocation3], 128, 128, 8
    $region9: #{dnn_forward.1} parent=1 // pred_fallthru
      _
    // Predicated region
    $region10: #{dnn_forward.1} parent=1 // pred_check
      _
    $region11: #{dnn_forward.1} parent=1 // pred_check_branch
      %26 = sbr.rel (0) target = $region13
    $region12: #{dnn_forward.1} parent=1 // pred_region
      _
    $region13: #{dnn_forward.1} parent=1 // pred_fallthru
      _
    // Predicated region
    $region14: #{dnn_forward.1} parent=1 // pred_check
      _
    $region15: #{dnn_forward.1} parent=1 // pred_check_branch
      %28 = sbr.rel (0) target = $region17
    $region16: #{dnn_forward.1} parent=1 // pred_region
      _
    $region17: #{dnn_forward.1} parent=1 // pred_fallthru
      _
    // Predicated region
    $region18: #{dnn_forward.1} parent=1 // pred_check
      _
    $region19: #{dnn_forward.1} parent=1 // pred_check_branch
      %30 = sbr.rel (0) target = $region21
    $region20: #{dnn_forward.1} parent=1 // pred_region
      _
    $region21: #{dnn_forward.1} parent=1 // pred_fallthru
      _
    // Predicated region
    $region22: #{dnn_forward.1} parent=1 // pred_check
      _
    $region23: #{dnn_forward.1} parent=1 // pred_check_branch
      %32 = sbr.rel (0) target = $region25
    $region24: #{dnn_forward.1} parent=1 // pred_region
      %33 = dma.done [#allocation3], 1024
    $region25: #{dnn_forward.1} parent=1 // pred_fallthru
      _
    %v34 = vld [vmem:[%s0] sm:$0x3]
    %v35 = vld [vmem:[#allocation2] sm:$0xff]
    %v36 = vld [vmem:[#allocation2 + $0x8] sm:$0xff]
    %v37 = vld [vmem:[#allocation2 + $0x10] sm:$0xff]
    %v38 = vld [vmem:[#allocation2 + $0x18] sm:$0xff]
    %v39 = vld [vmem:[#allocation2 + $0x20] sm:$0xff]
    %v40 = vld [vmem:[#allocation2 + $0x28] sm:$0xff]
    %v41 = vld [vmem:[#allocation2 + $0x30] sm:$0xff]
    %v42 = vld [vmem:[#allocation2 + $0x38] sm:$0xff]
    %v43 = vld [vmem:[%s2] sm:$0x1]
    %v45 = vlaneseq
    %v46 = vshrl.u32 %v45, 7
    %v47 = vsub.s32 0, %v46
    %v48 = vrot.slane %v43, %v47
    %vm50 = vcmask 523264
    %v52 = vsel %vm50, %v34, 0
    %54 = vmatprep.subr.mxu0 0.0
    %55 = vmatpush1.msra.mxu0 0.0
    %56 = vmatprep.subr.mxu0 0.0
    %57 = vmatpush1.msra.mxu0 0.0
    %58 = vmatprep.subr.mxu0 0.0
    %59 = vmatpush1.msra.mxu0 0.0
    %60 = vmatprep.subr.mxu0 0.0
    %61 = vmatpush1.msra.mxu0 0.0
    %62 = vmatprep.subr.mxu0 0.0
    %63 = vmatpush1.msra.mxu0 0.0
    %64 = vmatprep.subr.mxu0 0.0
    %65 = vmatpush1.msra.mxu0 0.0
    %66 = vmatprep.subr.mxu0 0.0
    %67 = vmatpush1.msra.mxu0 0.0
    %68 = vmatprep.subr.mxu0 0.0
    %69 = vmatpush1.msra.mxu0 0.0
    %70 = vmatprep.subr.mxu0 0.0
    %71 = vmatpush1.msra.mxu0 %v42
    %72 = vmatprep.subr.mxu0 0.0
    %73 = vmatpush1.msra.mxu0 %v41
    %74 = vmatprep.subr.mxu0 0.0
    %75 = vmatpush1.msra.mxu0 %v40
    %76 = vmatprep.subr.mxu0 0.0
    %77 = vmatpush1.msra.mxu0 %v39
    %78 = vmatprep.subr.mxu0 0.0
    %79 = vmatpush1.msra.mxu0 %v38
    %80 = vmatprep.subr.mxu0 0.0
    %81 = vmatpush1.msra.mxu0 %v37
    %82 = vmatprep.subr.mxu0 0.0
    %83 = vmatpush1.msra.mxu0 %v36
    %84 = vmatprep.subr.mxu0 0.0
    %85 = vmatpush1.msra.mxu0 %v35
    %86 = vmatprep.subr.mxu0 0.0
    %87 = vmatpush2.msra.mxu0 0.0
    %88 = vmatprep.subr.mxu0 0.0
    %89 = vmatpush2.msra.mxu0 0.0
    %90 = vmatprep.subr.mxu0 0.0
    %91 = vmatpush2.msra.mxu0 0.0
    %92 = vmatprep.subr.mxu0 0.0
    %93 = vmatpush2.msra.mxu0 0.0
    %94 = vmatprep.subr.mxu0 0.0
    %95 = vmatpush2.msra.mxu0 0.0
    %96 = vmatprep.subr.mxu0 0.0
    %97 = vmatpush2.msra.mxu0 0.0
    %98 = vmatprep.subr.mxu0 0.0
    %99 = vmatpush2.msra.mxu0 0.0
    %100 = vmatprep.subr.mxu0 0.0
    %101 = vmatpush2.msra.mxu0 0.0
    %102 = vmatprep.subr.mxu0 0.0
    %103 = vmatpush2.msra.mxu0 0.0
    %104 = vmatprep.subr.mxu0 0.0
    %105 = vmatpush2.msra.mxu0 0.0
    %106 = vmatprep.subr.mxu0 0.0
    %107 = vmatpush2.msra.mxu0 0.0
    %108 = vmatprep.subr.mxu0 0.0
    %109 = vmatpush2.msra.mxu0 0.0
    %110 = vmatprep.subr.mxu0 0.0
    %111 = vmatpush2.msra.mxu0 0.0
    %112 = vmatprep.subr.mxu0 0.0
    %113 = vmatpush2.msra.mxu0 0.0
    %114 = vmatprep.subr.mxu0 0.0
    %115 = vmatpush2.msra.mxu0 0.0
    %116 = vmatprep.subr.mxu0 0.0
    %117 = vmatpush2.msra.mxu0 0.0
    %118 = vmatprep.mubr.f32.mxu0 0.0
    %119 = vmatmul.mubr.f32.gmra.mxu0 %v52
    %v120 = vpop.f32.mrf.mxu0
    %v121 = vadd.f32 %v48, %v120
    %v122 = vpop.f32.mrf.mxu0
    %123 = vdwg.mxu0
    %v124 = vmax.f32 %v121, 0.0
    %v125 = vld [vmem:[%s3] sm:$0xff]
    %v126 = vld [vmem:[%s4] sm:$0xff]
    %128 = vset.pattern.permute.xlu0 0
    %129 = vperm.xlu0 %128, %v126
    %v130 = vpop.permute.xlu0 %129
    %132 = vmatprep.subr.mxu0 0.0
    %133 = vmatpush1.xpose.msra.mxu0 0.0
    %134 = vmatprep.subr.mxu0 0.0
    %135 = vmatpush1.xpose.msra.mxu0 0.0
    %136 = vmatprep.subr.mxu0 0.0
    %137 = vmatpush1.xpose.msra.mxu0 0.0
    %138 = vmatprep.subr.mxu0 0.0
    %139 = vmatpush1.xpose.msra.mxu0 0.0
    %140 = vmatprep.subr.mxu0 0.0
    %141 = vmatpush1.xpose.msra.mxu0 0.0
    %142 = vmatprep.subr.mxu0 0.0
    %143 = vmatpush1.xpose.msra.mxu0 0.0
    %144 = vmatprep.subr.mxu0 0.0
    %145 = vmatpush1.xpose.msra.mxu0 0.0
    %146 = vmatprep.subr.mxu0 0.0
    %147 = vmatpush1.xpose.msra.mxu0 0.0
    %148 = vmatprep.subr.mxu0 0.0
    %149 = vmatpush1.xpose.msra.mxu0 0.0
    %150 = vmatprep.subr.mxu0 0.0
    %151 = vmatpush1.xpose.msra.mxu0 0.0
    %152 = vmatprep.subr.mxu0 0.0
    %153 = vmatpush1.xpose.msra.mxu0 0.0
    %154 = vmatprep.subr.mxu0 0.0
    %155 = vmatpush1.xpose.msra.mxu0 0.0
    %156 = vmatprep.subr.mxu0 0.0
    %157 = vmatpush1.xpose.msra.mxu0 0.0
    %158 = vmatprep.subr.mxu0 0.0
    %159 = vmatpush1.xpose.msra.mxu0 0.0
    %160 = vmatprep.subr.mxu0 0.0
    %161 = vmatpush1.xpose.msra.mxu0 0.0
    %162 = vmatprep.subr.mxu0 0.0
    %163 = vmatpush1.xpose.msra.mxu0 %v124
    %164 = vmatprep.subr.mxu0 0.0
    %165 = vmatpush2.xpose.msra.mxu0 0.0
    %166 = vmatprep.subr.mxu0 0.0
    %167 = vmatpush2.xpose.msra.mxu0 0.0
    %168 = vmatprep.subr.mxu0 0.0
    %169 = vmatpush2.xpose.msra.mxu0 0.0
    %170 = vmatprep.subr.mxu0 0.0
    %171 = vmatpush2.xpose.msra.mxu0 0.0
    %172 = vmatprep.subr.mxu0 0.0
    %173 = vmatpush2.xpose.msra.mxu0 0.0
    %174 = vmatprep.subr.mxu0 0.0
    %175 = vmatpush2.xpose.msra.mxu0 0.0
    %176 = vmatprep.subr.mxu0 0.0
    %177 = vmatpush2.xpose.msra.mxu0 0.0
    %178 = vmatprep.subr.mxu0 0.0
    %179 = vmatpush2.xpose.msra.mxu0 0.0
    %180 = vmatprep.subr.mxu0 0.0
    %181 = vmatpush2.xpose.msra.mxu0 0.0
    %182 = vmatprep.subr.mxu0 0.0
    %183 = vmatpush2.xpose.msra.mxu0 0.0
    %184 = vmatprep.subr.mxu0 0.0
    %185 = vmatpush2.xpose.msra.mxu0 0.0
    %186 = vmatprep.subr.mxu0 0.0
    %187 = vmatpush2.xpose.msra.mxu0 0.0
    %188 = vmatprep.subr.mxu0 0.0
    %189 = vmatpush2.xpose.msra.mxu0 0.0
    %190 = vmatprep.subr.mxu0 0.0
    %191 = vmatpush2.xpose.msra.mxu0 0.0
    %192 = vmatprep.subr.mxu0 0.0
    %193 = vmatpush2.xpose.msra.mxu0 0.0
    %194 = vmatprep.subr.mxu0 0.0
    %195 = vmatpush2.xpose.msra.mxu0 0.0
    %196 = vmatprep.mubr.f32.mxu0 0.0
    %197 = vmatmul.mubr.f32.gmra.mxu0 %v125
    %v198 = vpop.f32.mrf.mxu0
    %v199 = vadd.f32 %v130, %v198
    %v200 = vpop.f32.mrf.mxu0
    %201 = vdwg.mxu0
    %vm202 = vcmask 15360
    %203 = vst.msk [vmem:[%s5] sm:$0xff] %vm202, %v199
    // Predicated region
    $region26: #{dnn_forward.1} parent=1 // pred_check
      _
    $region27: #{dnn_forward.1} parent=1 // pred_check_branch
      %205 = sbr.rel (0) target = $region29
    $region28: #{dnn_forward.1} parent=1 // pred_region
      _
    $region29: #{dnn_forward.1} parent=1 // pred_fallthru
      _
    // Predicated region
    $region30: #{dnn_forward.1} parent=1 // pred_check
      _
    $region31: #{dnn_forward.1} parent=1 // pred_check_branch
      %207 = sbr.rel (0) target = $region33
    $region32: #{dnn_forward.1} parent=1 // pred_region
      _
    $region33: #{dnn_forward.1} parent=1 // pred_fallthru
      _
    %208 = vsyncpa [#allocation3], 1

</llo_original>
